<compile_context>
chip_gen: v7x
topology: tpu7x:2x2x1
jax: 0.10.0
libtpu: 0.0.40
codegen_flags: <defaults>
</compile_context>

<pallas_src>
import math
import jax
import jax.numpy as jnp
from jax import lax
from jax.experimental import pallas as pl
from jax.experimental.pallas import tpu as pltpu


def _round_up(n, m):
    return ((n + m - 1) // m) * m


def _patch_embed_kernel(patches_ref, w_ref, b_ref, gamma_ref, beta_ref, out_ref):
    # patches_ref: (TM, K) bf16, w_ref: (K, E) bf16,
    # b/gamma/beta: (1, E) f32, out_ref: (TM, E) f32.
    x = jnp.dot(patches_ref[...], w_ref[...], preferred_element_type=jnp.float32)
    x = x + b_ref[...]                      # broadcast bias over rows (f32)

    # LayerNorm over last dim (embed_dim), eps = 1e-5 (PyTorch default).
    # One-pass statistics (single reduce for sum and sum-of-squares), with a
    # non-negativity clamp on the variance to guard against cancellation.
    e = x.shape[-1]
    inv_e = 1.0 / e
    s1 = jnp.sum(x, axis=-1, keepdims=True)
    s2 = jnp.sum(x * x, axis=-1, keepdims=True)
    mean = s1 * inv_e
    var = jnp.maximum(s2 * inv_e - mean * mean, 0.0)
    x_norm = (x - mean) * lax.rsqrt(var + 1e-5)
    out_ref[...] = x_norm * gamma_ref[...] + beta_ref[...]


def _choose_tm(M):
    """M-tile: multiple of 16 (bf16 packing), big cap, >=4 grid steps when M is large."""
    TM_MAX = 4096
    if M >= 4 * 1024:
        # Keep at least 4 grid steps (2 per TC on v7x) while each tile stays >=1024 rows.
        return min(TM_MAX, _round_up(pl.cdiv(M, 4), 16))
    return max(16, min(TM_MAX, _round_up(M, 16)))


def patch_embed_pallas(x, weight, bias, gamma, beta, *, patch_size, stride):
    """x: (B, C, H, W) float32.  weight: (E, C, kh, kw).  Returns (out, H_out, W_out)."""
    B, C, H, W = x.shape
    E, Cw, kh, kw = weight.shape
    assert Cw == C
    ph, pw = patch_size[0] // 2, patch_size[1] // 2

    H_out = (H + 2 * ph - kh) // stride + 1
    W_out = (W + 2 * pw - kw) // stride + 1

    # ---- glue: cast to bf16 FIRST, then zero-pad + im2col (pure data
    # movement, no compute), so the materialized intermediate is bf16. ----
    xb = x.astype(jnp.bfloat16)
    x_pad = jnp.pad(xb, ((0, 0), (0, 0), (ph, ph), (pw, pw)))
    cols = []
    for i in range(kh):
        for j in range(kw):
            cols.append(
                x_pad[:, :, i:i + stride * H_out:stride, j:j + stride * W_out:stride]
            )
    # (B, C, kh*kw, H_out, W_out) -> (B, H_out, W_out, C, kh*kw) -> (M, K)
    patches = jnp.stack(cols, axis=2)
    patches = jnp.transpose(patches, (0, 3, 4, 1, 2)).reshape(
        B * H_out * W_out, C * kh * kw
    )

    M, K = patches.shape

    # ---- M tiling: no explicit padding pass; rely on a partial last block.
    # (LayerNorm is per-row; OOB rows of a partial block are never written.) ----
    TM = _choose_tm(M)
    grid = (pl.cdiv(M, TM),)

    # weight (E, C, kh, kw) -> (C*kh*kw, E) so that patches @ w_mat == conv output.
    # K flattening order (c, i, j) matches the im2col construction above.
    w_mat = weight.reshape(E, C * kh * kw).T.astype(jnp.bfloat16)
    b_row = bias.reshape(1, E).astype(jnp.float32)
    g_row = gamma.reshape(1, E).astype(jnp.float32)
    be_row = beta.reshape(1, E).astype(jnp.float32)

    cost = pl.CostEstimate(
        flops=2 * M * K * E,
        transcendentals=M,                                     # one rsqrt per row
        bytes_accessed=(M * K * 2) + (K * E * 2) + (M * E * 4) + 3 * E * 4,
    )

    out = pl.pallas_call(
        _patch_embed_kernel,
        out_shape=jax.ShapeDtypeStruct((M, E), jnp.float32),
        grid_spec=pltpu.PrefetchScalarGridSpec(
            num_scalar_prefetch=0,
            grid=grid,
            in_specs=[
                pl.BlockSpec((TM, K), lambda i: (i, 0)),   # streamed per tile
                pl.BlockSpec((K, E), lambda i: (0, 0)),    # resident (constant block idx)
                pl.BlockSpec((1, E), lambda i: (0, 0)),
                pl.BlockSpec((1, E), lambda i: (0, 0)),
                pl.BlockSpec((1, E), lambda i: (0, 0)),
            ],
            out_specs=pl.BlockSpec((TM, E), lambda i: (i, 0)),
        ),
        compiler_params=pltpu.CompilerParams(
            dimension_semantics=("parallel",),             # megacore-shard M (v7x)
        ),
        cost_estimate=cost,
    )(patches, w_mat, b_row, g_row, be_row)

    # (M, E) -> (B, H_out*W_out, E)  (matches x.flatten(2).transpose(1, 2))
    out = out.reshape(B, H_out * W_out, E)
    return out, H_out, W_out


if __name__ == "__main__":
    # Small shapes consistent with the module: img=16, patch=7, stride=4,
    # in_chans=4, embed_dim=32, batch=2.
    B, C, Himg, Wimg = 2, 4, 16, 16
    patch = (7, 7)
    stride = 4
    E = 32

    key = jax.random.PRNGKey(0)
    kx, kw = jax.random.split(key)

    x = jax.random.normal(kx, (B, C, Himg, Wimg), dtype=jnp.float32)

    # Deterministic param init matching PatchEmbed._init_weights:
    #   conv weight ~ N(0, sqrt(2 / fan_out)), fan_out = kh*kw*E; conv bias = 0
    #   LayerNorm weight = 1, bias = 0
    fan_out = patch[0] * patch[1] * E
    w_conv = jax.random.normal(kw, (E, C, patch[0], patch[1]), dtype=jnp.float32) * math.sqrt(
        2.0 / fan_out
    )
    b_conv = jnp.zeros((E,), dtype=jnp.float32)
    ln_gamma = jnp.ones((E,), dtype=jnp.float32)
    ln_beta = jnp.zeros((E,), dtype=jnp.float32)

    out, H_out, W_out = patch_embed_pallas(
        x, w_conv, b_conv, ln_gamma, ln_beta, patch_size=patch, stride=stride
    )
    out = jax.block_until_ready(out)
    assert out.shape == (B, H_out * W_out, E)

    # ---- Check 1: against the f32 conv + LayerNorm reference (module
    # semantics); loose tolerance because the kernel reads bf16 operands. ----
    ref_conv = lax.conv_general_dilated(
        x, w_conv, window_strides=(stride, stride),
        padding=((patch[0] // 2, patch[0] // 2), (patch[1] // 2, patch[1] // 2)),
        dimension_numbers=("NCHW", "OIHW", "NCHW"),
    ) + b_conv.reshape(1, E, 1, 1)
    ref = jnp.transpose(ref_conv.reshape(B, E, H_out * W_out), (0, 2, 1))
    mu = jnp.mean(ref, axis=-1, keepdims=True)
    va = jnp.mean((ref - mu) ** 2, axis=-1, keepdims=True)
    ref = (ref - mu) / jnp.sqrt(va + 1e-5) * ln_gamma + ln_beta
    assert jnp.allclose(out, ref, atol=3e-2, rtol=3e-2)

    # ---- Check 2 (tight): against a bf16-matmul / f32-LN reference built the
    # same way the kernel computes, to verify the kernel math itself. ----
    ph, pw = patch[0] // 2, patch[1] // 2
    x_pad = jnp.pad(x, ((0, 0), (0, 0), (ph, ph), (pw, pw)))
    cols = []
    for i in range(patch[0]):
        for j in range(patch[1]):
            cols.append(
                x_pad[:, :, i:i + stride * H_out:stride, j:j + stride * W_out:stride]
            )
    pat = jnp.transpose(jnp.stack(cols, axis=2), (0, 3, 4, 1, 2)).reshape(
        B * H_out * W_out, C * patch[0] * patch[1]
    ).astype(jnp.bfloat16)
    wm = w_conv.reshape(E, -1).T.astype(jnp.bfloat16)
    y = jnp.dot(pat, wm, preferred_element_type=jnp.float32) + b_conv.reshape(1, E)
    mu2 = jnp.mean(y, axis=-1, keepdims=True)
    va2 = jnp.mean((y - mu2) ** 2, axis=-1, keepdims=True)
    ref2 = ((y - mu2) / jnp.sqrt(va2 + 1e-5) * ln_gamma + ln_beta).reshape(
        B, H_out * W_out, E
    )
    assert jnp.allclose(out, ref2, atol=1e-4, rtol=1e-4)

    print("KERNEL_OK")
</pallas_src>

<mosaic_0001>
module attributes {stable_mosaic.version = 11 : i64} {
  func.func @_patch_embed_kernel(%arg0: i32, %arg1: memref<32x196xbf16, #tpu.memory_space<vmem>>, %arg2: memref<196x32xbf16, #tpu.memory_space<vmem>>, %arg3: memref<1x32xf32, #tpu.memory_space<vmem>>, %arg4: memref<1x32xf32, #tpu.memory_space<vmem>>, %arg5: memref<1x32xf32, #tpu.memory_space<vmem>>, %arg6: memref<32x32xf32, #tpu.memory_space<vmem>>) attributes {dimension_semantics = [#tpu.dimension_semantics<parallel>], iteration_bounds = array<i64: 1>, scalar_prefetch = 0 : i64, scratch_operands = 0 : i64, tpu.core_type = #tpu.core_type<tc>, window_params = [{transform_indices = @transform_0, window_bounds = array<i64: 32, 196>}, {pipeline_mode = #tpu.pipeline_mode<synchronous>, transform_indices = @transform_1, window_bounds = array<i64: 196, 32>}, {pipeline_mode = #tpu.pipeline_mode<synchronous>, transform_indices = @transform_2, window_bounds = array<i64: 1, 32>}, {pipeline_mode = #tpu.pipeline_mode<synchronous>, transform_indices = @transform_3, window_bounds = array<i64: 1, 32>}, {pipeline_mode = #tpu.pipeline_mode<synchronous>, transform_indices = @transform_4, window_bounds = array<i64: 1, 32>}, {transform_indices = @transform_5, window_bounds = array<i64: 32, 32>}]} {
    %c0 = arith.constant 0 : index
    %c0_0 = arith.constant 0 : index
    %0 = vector.load %arg1[%c0, %c0_0] : memref<32x196xbf16, #tpu.memory_space<vmem>>, vector<32x196xbf16>
    %c0_1 = arith.constant 0 : index
    %c0_2 = arith.constant 0 : index
    %1 = vector.load %arg2[%c0_1, %c0_2] : memref<196x32xbf16, #tpu.memory_space<vmem>>, vector<196x32xbf16>
    %cst = arith.constant dense<0.000000e+00> : vector<32x32xf32>
    %2 = tpu.matmul %0, %1, %cst {dimension_numbers = #tpu.dot_dimension_numbers<[1], [0], [0], [1], [0, 0, 1, 1], [], []>} : vector<32x196xbf16>, vector<196x32xbf16>, vector<32x32xf32> -> vector<32x32xf32>
    %c0_3 = arith.constant 0 : index
    %c0_4 = arith.constant 0 : index
    %3 = vector.load %arg3[%c0_3, %c0_4] : memref<1x32xf32, #tpu.memory_space<vmem>>, vector<1x32xf32>
    %4 = vector.broadcast %3 : vector<1x32xf32> to vector<32x32xf32>
    %5 = arith.addf %2, %4 : vector<32x32xf32>
    %cst_5 = arith.constant dense<0.000000e+00> : vector<32xf32>
    %6 = vector.multi_reduction <add>, %5, %cst_5 [1] : vector<32x32xf32> to vector<32xf32>
    %7 = vector.shape_cast %6 : vector<32xf32> to vector<32x1xf32>
    %8 = arith.mulf %5, %5 : vector<32x32xf32>
    %cst_6 = arith.constant dense<0.000000e+00> : vector<32xf32>
    %9 = vector.multi_reduction <add>, %8, %cst_6 [1] : vector<32x32xf32> to vector<32xf32>
    %10 = vector.shape_cast %9 : vector<32xf32> to vector<32x1xf32>
    %cst_7 = arith.constant 3.125000e-02 : f32
    %11 = vector.broadcast %cst_7 : f32 to vector<32x1xf32>
    %12 = arith.mulf %7, %11 : vector<32x1xf32>
    %cst_8 = arith.constant 3.125000e-02 : f32
    %13 = vector.broadcast %cst_8 : f32 to vector<32x1xf32>
    %14 = arith.mulf %10, %13 : vector<32x1xf32>
    %15 = arith.mulf %12, %12 : vector<32x1xf32>
    %16 = arith.subf %14, %15 : vector<32x1xf32>
    %cst_9 = arith.constant 0.000000e+00 : f32
    %17 = vector.broadcast %cst_9 : f32 to vector<32x1xf32>
    %18 = arith.maximumf %16, %17 : vector<32x1xf32>
    %19 = vector.broadcast %12 : vector<32x1xf32> to vector<32x32xf32>
    %20 = arith.subf %5, %19 : vector<32x32xf32>
    %cst_10 = arith.constant 9.99999974E-6 : f32
    %21 = vector.broadcast %cst_10 : f32 to vector<32x1xf32>
    %22 = arith.addf %18, %21 : vector<32x1xf32>
    %23 = math.rsqrt %22 : vector<32x1xf32>
    %24 = vector.broadcast %23 : vector<32x1xf32> to vector<32x32xf32>
    %25 = arith.mulf %20, %24 : vector<32x32xf32>
    %c0_11 = arith.constant 0 : index
    %c0_12 = arith.constant 0 : index
    %26 = vector.load %arg4[%c0_11, %c0_12] : memref<1x32xf32, #tpu.memory_space<vmem>>, vector<1x32xf32>
    %27 = vector.broadcast %26 : vector<1x32xf32> to vector<32x32xf32>
    %28 = arith.mulf %25, %27 : vector<32x32xf32>
    %c0_13 = arith.constant 0 : index
    %c0_14 = arith.constant 0 : index
    %29 = vector.load %arg5[%c0_13, %c0_14] : memref<1x32xf32, #tpu.memory_space<vmem>>, vector<1x32xf32>
    %30 = vector.broadcast %29 : vector<1x32xf32> to vector<32x32xf32>
    %31 = arith.addf %28, %30 : vector<32x32xf32>
    %c0_15 = arith.constant 0 : index
    %c0_16 = arith.constant 0 : index
    %32 = vector.load %arg6[%c0_15, %c0_16] : memref<32x32xf32, #tpu.memory_space<vmem>>, vector<32x32xf32>
    tpu.vector_store %arg6[%c0_15, %c0_16], %31 {strides = array<i32>} : memref<32x32xf32, #tpu.memory_space<vmem>>, vector<32x32xf32>,
    return
  }
  func.func @transform_0(%arg0: i32) -> (i32, i32) {
    %c0_i32 = arith.constant 0 : i32
    %c0_i32_0 = arith.constant 0 : i32
    return %arg0, %c0_i32 : i32, i32
  }
  func.func @transform_1(%arg0: i32) -> (i32, i32) {
    %c0_i32 = arith.constant 0 : i32
    %c0_i32_0 = arith.constant 0 : i32
    %c0_i32_1 = arith.constant 0 : i32
    return %c0_i32, %c0_i32_0 : i32, i32
  }
  func.func @transform_2(%arg0: i32) -> (i32, i32) {
    %c0_i32 = arith.constant 0 : i32
    %c0_i32_0 = arith.constant 0 : i32
    %c0_i32_1 = arith.constant 0 : i32
    return %c0_i32, %c0_i32_0 : i32, i32
  }
  func.func @transform_3(%arg0: i32) -> (i32, i32) {
    %c0_i32 = arith.constant 0 : i32
    %c0_i32_0 = arith.constant 0 : i32
    %c0_i32_1 = arith.constant 0 : i32
    return %c0_i32, %c0_i32_0 : i32, i32
  }
  func.func @transform_4(%arg0: i32) -> (i32, i32) {
    %c0_i32 = arith.constant 0 : i32
    %c0_i32_0 = arith.constant 0 : i32
    %c0_i32_1 = arith.constant 0 : i32
    return %c0_i32, %c0_i32_0 : i32, i32
  }
  func.func @transform_5(%arg0: i32) -> (i32, i32) {
    %c0_i32 = arith.constant 0 : i32
    %c0_i32_0 = arith.constant 0 : i32
    return %arg0, %c0_i32 : i32, i32
  }
}

</mosaic_0001>

<llo_original>
// kernel: tpu_custom_call.1
$region0: #{tpu_custom_call.1}
  #allocation0 [shape = 'u32[]', space=smem, size = 0x4, offset = 0x4, fixed_abs, tag = 'smem constant byte address 0x4 - core index']
  #allocation1 [shape = 'u32[144,128]{1,0:T(1,128)}', space=vmem, size = 0x12000, scoped, tag = 'internal scratch']
  %s0 = inlined_call_operand.vmem [shape: bf16[32,196], index: 0, kind: input, shape index: {}]
  %s1 = inlined_call_operand.vmem [shape: bf16[196,32], index: 1, kind: input, shape index: {}]
  %s2 = inlined_call_operand.vmem [shape: f32[1,32], index: 2, kind: input, shape index: {}]
  %s3 = inlined_call_operand.vmem [shape: f32[1,32], index: 3, kind: input, shape index: {}]
  %s4 = inlined_call_operand.vmem [shape: f32[1,32], index: 4, kind: input, shape index: {}]
  %s5 = inlined_call_operand.hbm [shape: f32[32,32], index: 5, kind: output, shape index: {}]
  %s6 = sld [smem:[#allocation0]]
  $region30: #{tpu_custom_call.1} parent=0
    _
  %s8 = ssub.s32 1, %s6
  %s9 = scalar_select 0, %s8, %s6
  $region1: #{tpu_custom_call.1} parent=0
    #allocation2 [shape = 'u8[16384]{0}', space=vmem, size = 0x4000, scoped, tag = 'output window, operand 0, single buffered']
    #allocation3 [shape = 's32[1]{0}', space=sflag, size = 0x4, scoped, tag = 'scoped memory for tpu_custom_call.1']
    %10 = vsyncpa [#allocation3], 0
    // Predicated region
    $region2: #{tpu_custom_call.1} parent=1 // pred_check
      _
    $region3: #{tpu_custom_call.1} parent=1 // pred_check_branch
      %12 = sbr.rel (0) target = $region5
    $region4: #{tpu_custom_call.1} parent=1 // pred_region
      _
    $region5: #{tpu_custom_call.1} parent=1 // pred_fallthru
      _
    // Predicated region
    $region6: #{tpu_custom_call.1} parent=1 // pred_check
      _
    $region7: #{tpu_custom_call.1} parent=1 // pred_check_branch
      %14 = sbr.rel (0) target = $region9
    $region8: #{tpu_custom_call.1} parent=1 // pred_region
      _
    $region9: #{tpu_custom_call.1} parent=1 // pred_fallthru
      _
    // Predicated region
    $region10: #{tpu_custom_call.1} parent=1 // pred_check
      _
    $region11: #{tpu_custom_call.1} parent=1 // pred_check_branch
      %16 = sbr.rel (0) target = $region13
    $region12: #{tpu_custom_call.1} parent=1 // pred_region
      _
    $region13: #{tpu_custom_call.1} parent=1 // pred_fallthru
      _
    // Predicated region
    $region14: #{tpu_custom_call.1} parent=1 // pred_check
      _
    $region15: #{tpu_custom_call.1} parent=1 // pred_check_branch
      %18 = sbr.rel (0) target = $region17
    $region16: #{tpu_custom_call.1} parent=1 // pred_region
      _
    $region17: #{tpu_custom_call.1} parent=1 // pred_fallthru
      _
    // Predicated region
    $region18: #{tpu_custom_call.1} parent=1 // pred_check
      _
    $region19: #{tpu_custom_call.1} parent=1 // pred_check_branch
      %20 = sbr.rel (0) target = $region21
    $region20: #{tpu_custom_call.1} parent=1 // pred_region
      _
    $region21: #{tpu_custom_call.1} parent=1 // pred_fallthru
      _
    %v22 = vld [vmem:[%s0] sm:$0xff]
    %v23 = vld [vmem:[%s0 + $0x8] sm:$0xff]
    %v24 = vld [vmem:[%s0 + $0x10] sm:$0xff]
    %v25 = vld [vmem:[%s0 + $0x18] sm:$0xff]
    %v26 = vld [vmem:[%s1] sm:$0xf]
    %v27 = vld [vmem:[%s1 + $0x4] sm:$0xf]
    %v28 = vld [vmem:[%s1 + $0x8] sm:$0xf]
    %v29 = vld [vmem:[%s1 + $0xc] sm:$0xf]
    %v30 = vld [vmem:[%s1 + $0x10] sm:$0xf]
    %v31 = vld [vmem:[%s1 + $0x14] sm:$0xf]
    %v32 = vld [vmem:[%s1 + $0x18] sm:$0xf]
    %v33 = vld [vmem:[%s1 + $0x1c] sm:$0xf]
    %v34 = vld [vmem:[%s1 + $0x20] sm:$0xf]
    %v35 = vld [vmem:[%s1 + $0x24] sm:$0xf]
    %v36 = vld [vmem:[%s1 + $0x28] sm:$0xf]
    %v37 = vld [vmem:[%s1 + $0x2c] sm:$0xf]
    %v38 = vld [vmem:[%s1 + $0x30] sm:$0xf]
    %v39 = vld [vmem:[%s1 + $0x34] sm:$0xf]
    %v40 = vld [vmem:[%s1 + $0x38] sm:$0xf]
    %v41 = vld [vmem:[%s1 + $0x3c] sm:$0xf]
    %v42 = vld [vmem:[%s1 + $0x40] sm:$0xf]
    %v43 = vld [vmem:[%s1 + $0x44] sm:$0xf]
    %v44 = vld [vmem:[%s1 + $0x48] sm:$0xf]
    %v45 = vld [vmem:[%s1 + $0x4c] sm:$0xf]
    %v46 = vld [vmem:[%s1 + $0x50] sm:$0xf]
    %v47 = vld [vmem:[%s1 + $0x54] sm:$0xf]
    %v48 = vld [vmem:[%s1 + $0x58] sm:$0xf]
    %v49 = vld [vmem:[%s1 + $0x5c] sm:$0xf]
    %v50 = vld [vmem:[%s1 + $0x60] sm:$0x3]
    %v51 = vld [vmem:[%s2] sm:$0x1]
    %v53 = vlaneseq
    %v54 = vshrl.u32 %v53, 7
    %v55 = vsub.s32 0, %v54
    %v56 = vrot.slane %v51, %v55
    %v62 = vunpack.c.l.b16 %v22
    %v63 = vunpack.c.h.b16 %v22
    %v64 = vunpack.c.l.b16 %v23
    %v65 = vunpack.c.h.b16 %v23
    %v66 = vunpack.c.l.b16 %v24
    %v67 = vunpack.c.h.b16 %v24
    %v68 = vunpack.c.l.b16 %v25
    %v69 = vunpack.c.h.b16 %v25
    %v70 = vpack.c.b16 %v64, %v62
    %v71 = vpack.c.b16 %v65, %v63
    %v72 = vpack.c.b16 %v68, %v66
    %v73 = vpack.c.b16 %v69, %v67
    %v101 = vunpack.c.l.b16 %v26
    %v102 = vunpack.c.l.b16 %v27
    %v103 = vunpack.c.l.b16 %v28
    %v104 = vunpack.c.l.b16 %v29
    %v105 = vunpack.c.l.b16 %v30
    %v106 = vunpack.c.l.b16 %v31
    %v107 = vunpack.c.l.b16 %v32
    %v108 = vunpack.c.l.b16 %v33
    %v109 = vunpack.c.l.b16 %v34
    %v110 = vunpack.c.l.b16 %v35
    %v111 = vunpack.c.l.b16 %v36
    %v112 = vunpack.c.l.b16 %v37
    %v113 = vunpack.c.l.b16 %v38
    %v114 = vunpack.c.l.b16 %v39
    %v115 = vunpack.c.l.b16 %v40
    %v116 = vunpack.c.l.b16 %v41
    %v117 = vunpack.c.l.b16 %v42
    %v118 = vunpack.c.l.b16 %v43
    %v119 = vunpack.c.l.b16 %v44
    %v120 = vunpack.c.l.b16 %v45
    %v121 = vunpack.c.l.b16 %v46
    %v122 = vunpack.c.l.b16 %v47
    %v123 = vunpack.c.l.b16 %v48
    %v124 = vunpack.c.l.b16 %v49
    %v125 = vunpack.c.l.b16 %v50
    %v126 = vpack.c.b16 %v102, %v101
    %v127 = vpack.c.b16 %v104, %v103
    %v128 = vpack.c.b16 %v106, %v105
    %v129 = vpack.c.b16 %v108, %v107
    %v130 = vpack.c.b16 %v110, %v109
    %v131 = vpack.c.b16 %v112, %v111
    %v132 = vpack.c.b16 %v114, %v113
    %v133 = vpack.c.b16 %v116, %v115
    %v134 = vpack.c.b16 %v118, %v117
    %v135 = vpack.c.b16 %v120, %v119
    %v136 = vpack.c.b16 %v122, %v121
    %v137 = vpack.c.b16 %v124, %v123
    %v138 = vpack.c.b16 %v125, %v125
    %vm151 = vcmask 556032
    %v153 = vsel %vm151, %v71, 0
    %v156 = vsel %vm151, %v73, 0
    %vm158 = vcmask 1041408
    %v160 = vsel %vm158, %v138, 0
    %162 = vmatprep.subr.bf16.mxu0 0
    %163 = vmatpush1.bf16.msra.mxu0 %v126
    %164 = vmatprep.subr.bf16.mxu0 0
    %165 = vmatpush1.bf16.msra.mxu0 %v127
    %166 = vmatprep.subr.bf16.mxu0 0
    %167 = vmatpush1.bf16.msra.mxu0 %v128
    %168 = vmatprep.subr.bf16.mxu0 0
    %169 = vmatpush1.bf16.msra.mxu0 %v129
    %170 = vmatprep.subr.bf16.mxu0 0
    %171 = vmatpush1.bf16.msra.mxu0 %v130
    %172 = vmatprep.subr.bf16.mxu0 0
    %173 = vmatpush1.bf16.msra.mxu0 %v131
    %174 = vmatprep.subr.bf16.mxu0 0
    %175 = vmatpush1.bf16.msra.mxu0 %v132
    %176 = vmatprep.subr.bf16.mxu0 0
    %177 = vmatpush1.bf16.msra.mxu0 %v133
    %178 = vmatprep.subr.bf16.mxu0 0
    %179 = vmatpush1.bf16.msra.mxu0 %v134
    %180 = vmatprep.subr.bf16.mxu0 0
    %181 = vmatpush1.bf16.msra.mxu0 %v135
    %182 = vmatprep.subr.bf16.mxu0 0
    %183 = vmatpush1.bf16.msra.mxu0 %v136
    %184 = vmatprep.subr.bf16.mxu0 0
    %185 = vmatpush1.bf16.msra.mxu0 %v137
    %186 = vmatprep.subr.bf16.mxu0 0
    %187 = vmatpush1.bf16.msra.mxu0 %v160
    %188 = vmatprep.subr.bf16.mxu0 0
    %189 = vmatpush1.bf16.msra.mxu0 0
    %190 = vmatprep.subr.bf16.mxu0 0
    %191 = vmatpush1.bf16.msra.mxu0 0
    %192 = vmatprep.subr.bf16.mxu0 0
    %193 = vmatpush1.bf16.msra.mxu0 0
    %194 = vmatprep.mubr.bf16.mxu0 %v153
    %195 = vmatmul.mubr.bf16.gmra.mrb[0].mxu0 %v70
    %v196 = vpop.f32.mrb[0].mxu0
    %v197 = vadd.f32 %v56, %v196
    %v198 = vpop.f32.mrb[0].mxu0
    %v199 = vpop.f32.mrb[0].mxu0
    %v200 = vadd.f32 %v56, %v199
    %v201 = vpop.f32.mrb[0].mxu0
    %202 = vmatprep.mubr.bf16.mxu0 %v156
    %203 = vmatmul.mubr.bf16.gmra.mrb[0].mxu0 %v72
    %v204 = vpop.f32.mrb[0].mxu0
    %v205 = vadd.f32 %v56, %v204
    %v206 = vpop.f32.mrb[0].mxu0
    %v207 = vpop.f32.mrb[0].mxu0
    %v208 = vadd.f32 %v56, %v207
    %v209 = vpop.f32.mrb[0].mxu0
    %210 = vdwg.mxu0
    %vm211 = vcmask 261120
    %v212 = vsel %vm211, %v197, 0.0
    %213 = vadd.xlane.f32.xlu0 %v212
    %v214 = vpop.xlane.xlu0 %213
    %v215 = vsel %vm211, %v200, 0.0
    %216 = vadd.xlane.f32.xlu0 %v215
    %v217 = vpop.xlane.xlu0 %216
    %v218 = vsel %vm211, %v205, 0.0
    %219 = vadd.xlane.f32.xlu0 %v218
    %v220 = vpop.xlane.xlu0 %219
    %v221 = vsel %vm211, %v208, 0.0
    %222 = vadd.xlane.f32.xlu0 %v221
    %v223 = vpop.xlane.xlu0 %222
    %v224 = vmul.f32 %v197, %v197
    %v225 = vmul.f32 %v200, %v200
    %v226 = vmul.f32 %v205, %v205
    %v227 = vmul.f32 %v208, %v208
    %v228 = vsel %vm211, %v224, 0.0
    %229 = vadd.xlane.f32.xlu0 %v228
    %v230 = vpop.xlane.xlu0 %229
    %v231 = vsel %vm211, %v225, 0.0
    %232 = vadd.xlane.f32.xlu0 %v231
    %v233 = vpop.xlane.xlu0 %232
    %v234 = vsel %vm211, %v226, 0.0
    %235 = vadd.xlane.f32.xlu0 %v234
    %v236 = vpop.xlane.xlu0 %235
    %v237 = vsel %vm211, %v227, 0.0
    %238 = vadd.xlane.f32.xlu0 %v237
    %v239 = vpop.xlane.xlu0 %238
    %v240 = vmul.f32 %v214, 0.03125
    %v241 = vmul.f32 %v217, 0.03125
    %v242 = vmul.f32 %v220, 0.03125
    %v243 = vmul.f32 %v223, 0.03125
    %v244 = vmul.f32 %v230, 0.03125
    %v245 = vmul.f32 %v233, 0.03125
    %v246 = vmul.f32 %v236, 0.03125
    %v247 = vmul.f32 %v239, 0.03125
    %v248 = vmul.f32 %v240, %v240
    %v249 = vmul.f32 %v241, %v241
    %v250 = vmul.f32 %v242, %v242
    %v251 = vmul.f32 %v243, %v243
    %v252 = vsub.f32 %v244, %v248
    %v253 = vsub.f32 %v245, %v249
    %v254 = vsub.f32 %v246, %v250
    %v255 = vsub.f32 %v247, %v251
    %v256 = vmax.f32 %v252, 0.0
    %v257 = vmax.f32 %v253, 0.0
    %v258 = vmax.f32 %v254, 0.0
    %v259 = vmax.f32 %v255, 0.0
    %v260 = vsub.f32 %v197, %v240
    %v261 = vsub.f32 %v200, %v241
    %v262 = vsub.f32 %v205, %v242
    %v263 = vsub.f32 %v208, %v243
    %v264 = vadd.f32 %v256, 1e-05
    %v265 = vadd.f32 %v257, 1e-05
    %v266 = vadd.f32 %v258, 1e-05
    %v267 = vadd.f32 %v259, 1e-05
    %v268 = vrsqrt.pop %v264
    %v269 = vrsqrt.pop %v265
    %v270 = vrsqrt.pop %v266
    %v271 = vrsqrt.pop %v267
    %v272 = vmul.f32 %v260, %v268
    %v273 = vmul.f32 %v261, %v269
    %v274 = vmul.f32 %v262, %v270
    %v275 = vmul.f32 %v263, %v271
    %v276 = vld [vmem:[%s3] sm:$0x1]
    %v278 = vlaneseq
    %v279 = vshrl.u32 %v278, 7
    %v280 = vsub.s32 0, %v279
    %v281 = vrot.slane %v276, %v280
    %v283 = vmul.f32 %v272, %v281
    %v284 = vmul.f32 %v273, %v281
    %v285 = vmul.f32 %v274, %v281
    %v286 = vmul.f32 %v275, %v281
    %v287 = vld [vmem:[%s4] sm:$0x1]
    %v289 = vlaneseq
    %v290 = vshrl.u32 %v289, 7
    %v291 = vsub.s32 0, %v290
    %v292 = vrot.slane %v287, %v291
    %v294 = vadd.f32 %v283, %v292
    %v295 = vadd.f32 %v284, %v292
    %v296 = vadd.f32 %v285, %v292
    %v297 = vadd.f32 %v286, %v292
    %298 = vst.msk [vmem:[#allocation2] sm:$0xff] %vm211, %v294
    %299 = vst.msk [vmem:[#allocation2 + $0x8] sm:$0xff] %vm211, %v295
    %300 = vst.msk [vmem:[#allocation2 + $0x10] sm:$0xff] %vm211, %v296
    %301 = vst.msk [vmem:[#allocation2 + $0x18] sm:$0xff] %vm211, %v297
    // Predicated region
    $region22: #{tpu_custom_call.1} parent=1 // pred_check
      _
    $region23: #{tpu_custom_call.1} parent=1 // pred_check_branch
      %303 = sbr.rel (0) target = $region25
    $region24: #{tpu_custom_call.1} parent=1 // pred_region
      %s305 = ssub.s32 512, 512
      %306 = vsyncadd [#allocation3], %s305
      %s307 = sshll.u32 [#allocation2], 4
      %s308 = int_to_ptr.vmem [resolvable:$true] %s307
      %313 = dma.vmem_to_hbm [thread:$0]  %s308, 512, %s5, [#allocation3], 128, 128, 8
    $region25: #{tpu_custom_call.1} parent=1 // pred_fallthru
      _
    // Predicated region
    $region26: #{tpu_custom_call.1} parent=1 // pred_check
      _
    $region27: #{tpu_custom_call.1} parent=1 // pred_check_branch
      %315 = sbr.rel (0) target = $region29
    $region28: #{tpu_custom_call.1} parent=1 // pred_region
      %316 = dma.done [#allocation3], 512
    $region29: #{tpu_custom_call.1} parent=1 // pred_fallthru
      _
    %317 = vsyncpa [#allocation3], 1

</llo_original>
